<compile_context>
chip_gen: v5e
topology: v5e:2x2
jax: 0.10.0
libtpu: 0.0.40
codegen_flags: <defaults>
</compile_context>

<pallas_src>
import functools

import jax
import jax.numpy as jnp
from jax.experimental import pallas as pl
from jax.experimental.pallas import tpu as pltpu

NN_LAYER_1 = 256
NN_LAYER_2 = 256
_LANE = 128


def _round_up(n, m):
    return ((n + m - 1) // m) * m


def _policy_kernel(x_ref, w1_ref, b1_ref, w2_ref, b2_ref, w3_ref, b3_ref, out_ref):
    # fc1 + ReLU : bf16 x bf16 MXU matmul, f32 accumulation; elementwise in f32.
    h1 = jnp.dot(x_ref[...], w1_ref[...], preferred_element_type=jnp.float32) + b1_ref[...]
    h1 = jnp.maximum(h1, 0.0)
    # fc2 + ReLU
    h2 = jnp.dot(h1.astype(jnp.bfloat16), w2_ref[...],
                 preferred_element_type=jnp.float32) + b2_ref[...]
    h2 = jnp.maximum(h2, 0.0)
    # fc_mu + tanh (tanh -> EUP slot, effectively free alongside the MXU)
    mu = jnp.dot(h2.astype(jnp.bfloat16), w3_ref[...],
                 preferred_element_type=jnp.float32) + b3_ref[...]
    out_ref[...] = jnp.tanh(mu)


def pack_params(params):
    """Cast weights to bf16 and pad the last layer's output lanes to a multiple of 128
    (zero-padded columns produce tanh(0)=0 and are sliced off in the wrapper)."""
    act_dim = params["w3"].shape[1]
    act_pad = _round_up(act_dim, _LANE)
    w3 = jnp.zeros((NN_LAYER_2, act_pad), jnp.float32).at[:, :act_dim].set(params["w3"])
    b3 = jnp.zeros((1, act_pad), jnp.float32).at[:, :act_dim].set(params["b3"])
    packed = {
        "w1": params["w1"].astype(jnp.bfloat16),
        "b1": params["b1"].astype(jnp.float32),
        "w2": params["w2"].astype(jnp.bfloat16),
        "b2": params["b2"].astype(jnp.float32),
        "w3": w3.astype(jnp.bfloat16),
        "b3": b3.astype(jnp.float32),
    }
    return packed, act_dim


@functools.partial(jax.jit, static_argnames=("act_dim", "tb"))
def double_policy_net_forward(x, packed, *, act_dim, tb=512):
    """x: (B, state_dim) f32. packed: dict from pack_params. Returns (B, act_dim) f32."""
    B, state_dim = x.shape
    act_pad = packed["w3"].shape[1]

    # Batch tile: at least 8 sublanes, at most `tb` (tb must be a multiple of 8).
    tb_eff = min(tb, _round_up(B, 8))
    b_pad = _round_up(B, tb_eff)
    grid = (b_pad // tb_eff,)

    # Pad batch to a whole number of tiles and cast activations to bf16 (halves x DMA).
    x_bf = jnp.zeros((b_pad, state_dim), jnp.bfloat16).at[:B].set(x.astype(jnp.bfloat16))

    def resident_spec(op):
        # Weights/biases: full-array block, same block index at every grid step
        # -> stays resident in VMEM. ndim bound eagerly (no late-binding bug).
        nd = op.ndim
        return pl.BlockSpec(op.shape, lambda i, _nd=nd: (0,) * _nd)

    in_specs = [pl.BlockSpec((tb_eff, state_dim), lambda i: (i, 0))] + [
        resident_spec(packed[k]) for k in ("w1", "b1", "w2", "b2", "w3", "b3")
    ]
    out_spec = pl.BlockSpec((tb_eff, act_pad), lambda i: (i, 0))

    out_padded = pl.pallas_call(
        _policy_kernel,
        out_shape=jax.ShapeDtypeStruct((b_pad, act_pad), jnp.float32),
        grid=grid,
        in_specs=in_specs,
        out_specs=out_spec,
        compiler_params=pltpu.CompilerParams(
            dimension_semantics=("parallel",)),  # v7x: shard batch tiles across 2 TCs
    )(x_bf, packed["w1"], packed["b1"], packed["w2"], packed["b2"],
      packed["w3"], packed["b3"])

    return out_padded[:B, :act_dim]


def init_params(key, state_dim, act_dim):
    """Deterministic init mimicking nn.Linear default (uniform +/- 1/sqrt(fan_in)),
    stored transposed: (in_features, out_features)."""
    def linear(k, fan_in, fan_out):
        kw, kb = jax.random.split(k)
        bound = 1.0 / jnp.sqrt(fan_in)
        w = jax.random.uniform(kw, (fan_in, fan_out), jnp.float32, -bound, bound)
        b = jax.random.uniform(kb, (1, fan_out), jnp.float32, -bound, bound)
        return w, b

    k1, k2, k3 = jax.random.split(key, 3)
    w1, b1 = linear(k1, state_dim, NN_LAYER_1)
    w2, b2 = linear(k2, NN_LAYER_1, NN_LAYER_2)
    w3, b3 = linear(k3, NN_LAYER_2, act_dim)
    return {"w1": w1, "b1": b1, "w2": w2, "b2": b2, "w3": w3, "b3": b3}


def reference_forward(x, packed, act_dim):
    """Pure-JAX reference of the exact kernel math (same bf16 casts, f32 accumulate)."""
    xf = x.astype(jnp.bfloat16).astype(jnp.float32)
    w1 = packed["w1"].astype(jnp.float32)
    w2 = packed["w2"].astype(jnp.float32)
    w3 = packed["w3"].astype(jnp.float32)
    h1 = jnp.maximum(xf @ w1 + packed["b1"], 0.0)
    h2 = jnp.maximum(h1.astype(jnp.bfloat16).astype(jnp.float32) @ w2 + packed["b2"], 0.0)
    mu = jnp.tanh(h2.astype(jnp.bfloat16).astype(jnp.float32) @ w3 + packed["b3"])
    return mu[:, :act_dim]


if __name__ == "__main__":
    key = jax.random.PRNGKey(0)
    k_params, k_x, k_x2 = jax.random.split(key, 3)

    batch = 2
    state_dim = 16   # small synthetic state dimension
    act_dim = 2      # e.g. steering + throttle

    raw_params = init_params(k_params, state_dim, act_dim)
    packed, act_dim_out = pack_params(raw_params)

    # Small demo batch (overhead-dominated regime, single 8-row tile).
    x = jax.random.normal(k_x, (batch, state_dim), jnp.float32)
    mu = jax.block_until_ready(double_policy_net_forward(x, packed, act_dim=act_dim_out))
    ref = jax.block_until_ready(reference_forward(x, packed, act_dim_out))
    assert mu.shape == (batch, act_dim)
    assert jnp.allclose(mu, ref, atol=1e-4, rtol=1e-4), "mismatch vs reference (B=2)"

    # Batched path: multi-tile grid with padding + VMEM-resident weights.
    big_batch = 300
    x_big = jax.random.normal(k_x2, (big_batch, state_dim), jnp.float32)
    mu_big = jax.block_until_ready(
        double_policy_net_forward(x_big, packed, act_dim=act_dim_out, tb=128))
    ref_big = jax.block_until_ready(reference_forward(x_big, packed, act_dim_out))
    assert mu_big.shape == (big_batch, act_dim)
    assert jnp.allclose(mu_big, ref_big, atol=1e-4, rtol=1e-4), "mismatch vs reference (B=300)"

    print("KERNEL_OK")
</pallas_src>

<mosaic_0001>
module attributes {stable_mosaic.version = 11 : i64} {
  func.func @_policy_kernel(%arg0: i32, %arg1: memref<8x16xbf16, #tpu.memory_space<vmem>>, %arg2: memref<16x256xbf16, #tpu.memory_space<vmem>>, %arg3: memref<1x256xf32, #tpu.memory_space<vmem>>, %arg4: memref<256x256xbf16, #tpu.memory_space<vmem>>, %arg5: memref<1x256xf32, #tpu.memory_space<vmem>>, %arg6: memref<256x128xbf16, #tpu.memory_space<vmem>>, %arg7: memref<1x128xf32, #tpu.memory_space<vmem>>, %arg8: memref<8x128xf32, #tpu.memory_space<vmem>>) attributes {dimension_semantics = [#tpu.dimension_semantics<parallel>], iteration_bounds = array<i64: 1>, scalar_prefetch = 0 : i64, scratch_operands = 0 : i64, tpu.core_type = #tpu.core_type<tc>, window_params = [{transform_indices = @transform_0, window_bounds = array<i64: 8, 16>}, {pipeline_mode = #tpu.pipeline_mode<synchronous>, transform_indices = @transform_1, window_bounds = array<i64: 16, 256>}, {pipeline_mode = #tpu.pipeline_mode<synchronous>, transform_indices = @transform_2, window_bounds = array<i64: 1, 256>}, {pipeline_mode = #tpu.pipeline_mode<synchronous>, transform_indices = @transform_3, window_bounds = array<i64: 256, 256>}, {pipeline_mode = #tpu.pipeline_mode<synchronous>, transform_indices = @transform_4, window_bounds = array<i64: 1, 256>}, {pipeline_mode = #tpu.pipeline_mode<synchronous>, transform_indices = @transform_5, window_bounds = array<i64: 256, 128>}, {pipeline_mode = #tpu.pipeline_mode<synchronous>, transform_indices = @transform_6, window_bounds = array<i64: 1, 128>}, {transform_indices = @transform_7, window_bounds = array<i64: 8, 128>}]} {
    %c0 = arith.constant 0 : index
    %c0_0 = arith.constant 0 : index
    %0 = vector.load %arg1[%c0, %c0_0] : memref<8x16xbf16, #tpu.memory_space<vmem>>, vector<8x16xbf16>
    %c0_1 = arith.constant 0 : index
    %c0_2 = arith.constant 0 : index
    %1 = vector.load %arg2[%c0_1, %c0_2] : memref<16x256xbf16, #tpu.memory_space<vmem>>, vector<16x256xbf16>
    %cst = arith.constant dense<0.000000e+00> : vector<8x256xf32>
    %2 = tpu.matmul %0, %1, %cst {dimension_numbers = #tpu.dot_dimension_numbers<[1], [0], [0], [1], [0, 0, 1, 1], [], []>} : vector<8x16xbf16>, vector<16x256xbf16>, vector<8x256xf32> -> vector<8x256xf32>
    %c0_3 = arith.constant 0 : index
    %c0_4 = arith.constant 0 : index
    %3 = vector.load %arg3[%c0_3, %c0_4] : memref<1x256xf32, #tpu.memory_space<vmem>>, vector<1x256xf32>
    %4 = vector.broadcast %3 : vector<1x256xf32> to vector<8x256xf32>
    %5 = arith.addf %2, %4 : vector<8x256xf32>
    %cst_5 = arith.constant 0.000000e+00 : f32
    %6 = vector.broadcast %cst_5 : f32 to vector<8x256xf32>
    %7 = arith.maximumf %5, %6 : vector<8x256xf32>
    %8 = arith.truncf %7 : vector<8x256xf32> to vector<8x256xbf16>
    %c0_6 = arith.constant 0 : index
    %c0_7 = arith.constant 0 : index
    %9 = vector.load %arg4[%c0_6, %c0_7] : memref<256x256xbf16, #tpu.memory_space<vmem>>, vector<256x256xbf16>
    %cst_8 = arith.constant dense<0.000000e+00> : vector<8x256xf32>
    %10 = tpu.matmul %8, %9, %cst_8 {dimension_numbers = #tpu.dot_dimension_numbers<[1], [0], [0], [1], [0, 0, 1, 1], [], []>} : vector<8x256xbf16>, vector<256x256xbf16>, vector<8x256xf32> -> vector<8x256xf32>
    %c0_9 = arith.constant 0 : index
    %c0_10 = arith.constant 0 : index
    %11 = vector.load %arg5[%c0_9, %c0_10] : memref<1x256xf32, #tpu.memory_space<vmem>>, vector<1x256xf32>
    %12 = vector.broadcast %11 : vector<1x256xf32> to vector<8x256xf32>
    %13 = arith.addf %10, %12 : vector<8x256xf32>
    %cst_11 = arith.constant 0.000000e+00 : f32
    %14 = vector.broadcast %cst_11 : f32 to vector<8x256xf32>
    %15 = arith.maximumf %13, %14 : vector<8x256xf32>
    %16 = arith.truncf %15 : vector<8x256xf32> to vector<8x256xbf16>
    %c0_12 = arith.constant 0 : index
    %c0_13 = arith.constant 0 : index
    %17 = vector.load %arg6[%c0_12, %c0_13] : memref<256x128xbf16, #tpu.memory_space<vmem>>, vector<256x128xbf16>
    %cst_14 = arith.constant dense<0.000000e+00> : vector<8x128xf32>
    %18 = tpu.matmul %16, %17, %cst_14 {dimension_numbers = #tpu.dot_dimension_numbers<[1], [0], [0], [1], [0, 0, 1, 1], [], []>} : vector<8x256xbf16>, vector<256x128xbf16>, vector<8x128xf32> -> vector<8x128xf32>
    %c0_15 = arith.constant 0 : index
    %c0_16 = arith.constant 0 : index
    %19 = vector.load %arg7[%c0_15, %c0_16] : memref<1x128xf32, #tpu.memory_space<vmem>>, vector<1x128xf32>
    %20 = vector.broadcast %19 : vector<1x128xf32> to vector<8x128xf32>
    %21 = arith.addf %18, %20 : vector<8x128xf32>
    %22 = math.tanh %21 : vector<8x128xf32>
    %c0_17 = arith.constant 0 : index
    %c0_18 = arith.constant 0 : index
    %23 = vector.load %arg8[%c0_17, %c0_18] : memref<8x128xf32, #tpu.memory_space<vmem>>, vector<8x128xf32>
    tpu.vector_store %arg8[%c0_17, %c0_18], %22 {strides = array<i32>} : memref<8x128xf32, #tpu.memory_space<vmem>>, vector<8x128xf32>,
    return
  }
  func.func @transform_0(%arg0: i32) -> (i32, i32) {
    %c0_i32 = arith.constant 0 : i32
    %c0_i32_0 = arith.constant 0 : i32
    return %arg0, %c0_i32 : i32, i32
  }
  func.func @transform_1(%arg0: i32) -> (i32, i32) {
    %c0_i32 = arith.constant 0 : i32
    %c0_i32_0 = arith.constant 0 : i32
    %c0_i32_1 = arith.constant 0 : i32
    return %c0_i32, %c0_i32_0 : i32, i32
  }
  func.func @transform_2(%arg0: i32) -> (i32, i32) {
    %c0_i32 = arith.constant 0 : i32
    %c0_i32_0 = arith.constant 0 : i32
    %c0_i32_1 = arith.constant 0 : i32
    return %c0_i32, %c0_i32_0 : i32, i32
  }
  func.func @transform_3(%arg0: i32) -> (i32, i32) {
    %c0_i32 = arith.constant 0 : i32
    %c0_i32_0 = arith.constant 0 : i32
    %c0_i32_1 = arith.constant 0 : i32
    return %c0_i32, %c0_i32_0 : i32, i32
  }
  func.func @transform_4(%arg0: i32) -> (i32, i32) {
    %c0_i32 = arith.constant 0 : i32
    %c0_i32_0 = arith.constant 0 : i32
    %c0_i32_1 = arith.constant 0 : i32
    return %c0_i32, %c0_i32_0 : i32, i32
  }
  func.func @transform_5(%arg0: i32) -> (i32, i32) {
    %c0_i32 = arith.constant 0 : i32
    %c0_i32_0 = arith.constant 0 : i32
    %c0_i32_1 = arith.constant 0 : i32
    return %c0_i32, %c0_i32_0 : i32, i32
  }
  func.func @transform_6(%arg0: i32) -> (i32, i32) {
    %c0_i32 = arith.constant 0 : i32
    %c0_i32_0 = arith.constant 0 : i32
    %c0_i32_1 = arith.constant 0 : i32
    return %c0_i32, %c0_i32_0 : i32, i32
  }
  func.func @transform_7(%arg0: i32) -> (i32, i32) {
    %c0_i32 = arith.constant 0 : i32
    %c0_i32_0 = arith.constant 0 : i32
    return %arg0, %c0_i32 : i32, i32
  }
}

</mosaic_0001>

<llo_original>
// kernel: double_policy_net_forward.1
$region0: #{double_policy_net_forward.1}
  #allocation0 [shape = 'u32[]', space=smem, size = 0x4, offset = 0x4, fixed_abs, tag = 'smem constant byte address 0x4 - core index']
  #allocation1 [shape = 'u32[72,128]{1,0:T(1,128)}', space=vmem, size = 0x9000, scoped, tag = 'internal scratch']
  %s0 = inlined_call_operand.vmem [shape: bf16[8,16], index: 0, kind: input, shape index: {}]
  %s1 = inlined_call_operand.hbm [shape: bf16[16,256], index: 1, kind: input, shape index: {}]
  %s2 = inlined_call_operand.vmem [shape: f32[1,256], index: 2, kind: input, shape index: {}]
  %s3 = inlined_call_operand.hbm [shape: bf16[256,256], index: 3, kind: input, shape index: {}]
  %s4 = inlined_call_operand.vmem [shape: f32[1,256], index: 4, kind: input, shape index: {}]
  %s5 = inlined_call_operand.hbm [shape: bf16[256,128], index: 5, kind: input, shape index: {}]
  %s6 = inlined_call_operand.vmem [shape: f32[1,128], index: 6, kind: input, shape index: {}]
  %s7 = inlined_call_operand.vmem [shape: f32[8,128], index: 7, kind: output, shape index: {}]
  %s8 = sld [smem:[#allocation0]]
  $region50: #{double_policy_net_forward.1} parent=0
    _
  %s10 = ssub.s32 1, %s8
  %s11 = scalar_select 0, %s10, %s8
  $region1: #{double_policy_net_forward.1} parent=0
    #allocation2 [shape = 'u8[8192]{0}', space=vmem, size = 0x2000, scoped, tag = 'input window, operand 1, single buffered']
    #allocation3 [shape = 's32[1]{0}', space=sflag, size = 0x4, scoped, tag = 'scoped memory for double_policy_net_forward.1']
    #allocation4 [shape = 'u8[131072]{0}', space=vmem, size = 0x20000, scoped, tag = 'input window, operand 3, single buffered']
    #allocation5 [shape = 's32[1]{0}', space=sflag, size = 0x4, scoped, tag = 'scoped memory for double_policy_net_forward.1']
    #allocation6 [shape = 'u8[65536]{0}', space=vmem, size = 0x10000, scoped, tag = 'input window, operand 5, single buffered']
    %12 = vsyncpa [#allocation3], 0
    %13 = vsyncpa [#allocation5], 0
    // Predicated region
    $region2: #{double_policy_net_forward.1} parent=1 // pred_check
      _
    $region3: #{double_policy_net_forward.1} parent=1 // pred_check_branch
      %15 = sbr.rel (0) target = $region5
    $region4: #{double_policy_net_forward.1} parent=1 // pred_region
      _
    $region5: #{double_policy_net_forward.1} parent=1 // pred_fallthru
      _
    // Predicated region
    $region6: #{double_policy_net_forward.1} parent=1 // pred_check
      _
    $region7: #{double_policy_net_forward.1} parent=1 // pred_check_branch
      %17 = sbr.rel (0) target = $region9
    $region8: #{double_policy_net_forward.1} parent=1 // pred_region
      %19 = vsyncadd [#allocation3], 0
      %s20 = sshll.u32 %s1, 4
      %s21 = int_to_ptr.hbm [resolvable:$true] %s20
      %s22 = sshll.u32 [#allocation2], 4
      %s23 = int_to_ptr.vmem [resolvable:$true] %s22
      %28 = dma.hbm_to_vmem [thread:$0]  %s21, 256, %s23, [#allocation3], 128, 128, 8
    $region9: #{double_policy_net_forward.1} parent=1 // pred_fallthru
      _
    // Predicated region
    $region10: #{double_policy_net_forward.1} parent=1 // pred_check
      _
    $region11: #{double_policy_net_forward.1} parent=1 // pred_check_branch
      %30 = sbr.rel (0) target = $region13
    $region12: #{double_policy_net_forward.1} parent=1 // pred_region
      _
    $region13: #{double_policy_net_forward.1} parent=1 // pred_fallthru
      _
    // Predicated region
    $region14: #{double_policy_net_forward.1} parent=1 // pred_check
      _
    $region15: #{double_policy_net_forward.1} parent=1 // pred_check_branch
      %32 = sbr.rel (0) target = $region17
    $region16: #{double_policy_net_forward.1} parent=1 // pred_region
      %34 = vsyncadd [#allocation5], 0
      %s35 = sshll.u32 %s3, 4
      %s36 = int_to_ptr.hbm [resolvable:$true] %s35
      %s37 = sshll.u32 [#allocation4], 4
      %s38 = int_to_ptr.vmem [resolvable:$true] %s37
      %43 = dma.hbm_to_vmem [thread:$0]  %s36, 4096, %s38, [#allocation5], 128, 128, 8
    $region17: #{double_policy_net_forward.1} parent=1 // pred_fallthru
      _
    // Predicated region
    $region18: #{double_policy_net_forward.1} parent=1 // pred_check
      _
    $region19: #{double_policy_net_forward.1} parent=1 // pred_check_branch
      %45 = sbr.rel (0) target = $region21
    $region20: #{double_policy_net_forward.1} parent=1 // pred_region
      _
    $region21: #{double_policy_net_forward.1} parent=1 // pred_fallthru
      _
    // Predicated region
    $region22: #{double_policy_net_forward.1} parent=1 // pred_check
      _
    $region23: #{double_policy_net_forward.1} parent=1 // pred_check_branch
      %47 = sbr.rel (0) target = $region25
    $region24: #{double_policy_net_forward.1} parent=1 // pred_region
      %49 = vsyncadd [#allocation5], 0
      %s50 = sshll.u32 %s5, 4
      %s51 = int_to_ptr.hbm [resolvable:$true] %s50
      %s52 = sshll.u32 [#allocation6], 4
      %s53 = int_to_ptr.vmem [resolvable:$true] %s52
      %58 = dma.hbm_to_vmem [thread:$0]  %s51, 2048, %s53, [#allocation5], 64, 64, 4
    $region25: #{double_policy_net_forward.1} parent=1 // pred_fallthru
      _
    // Predicated region
    $region26: #{double_policy_net_forward.1} parent=1 // pred_check
      _
    $region27: #{double_policy_net_forward.1} parent=1 // pred_check_branch
      %60 = sbr.rel (0) target = $region29
    $region28: #{double_policy_net_forward.1} parent=1 // pred_region
      _
    $region29: #{double_policy_net_forward.1} parent=1 // pred_fallthru
      _
    // Predicated region
    $region30: #{double_policy_net_forward.1} parent=1 // pred_check
      _
    $region31: #{double_policy_net_forward.1} parent=1 // pred_check_branch
      %62 = sbr.rel (0) target = $region33
    $region32: #{double_policy_net_forward.1} parent=1 // pred_region
      %64 = dma.done [#allocation3], 256
    $region33: #{double_policy_net_forward.1} parent=1 // pred_fallthru
      _
    // Predicated region
    $region34: #{double_policy_net_forward.1} parent=1 // pred_check
      _
    $region35: #{double_policy_net_forward.1} parent=1 // pred_check_branch
      %66 = sbr.rel (0) target = $region37
    $region36: #{double_policy_net_forward.1} parent=1 // pred_region
      %68 = dma.done [#allocation5], 4096
    $region37: #{double_policy_net_forward.1} parent=1 // pred_fallthru
      _
    // Predicated region
    $region38: #{double_policy_net_forward.1} parent=1 // pred_check
      _
    $region39: #{double_policy_net_forward.1} parent=1 // pred_check_branch
      %70 = sbr.rel (0) target = $region41
    $region40: #{double_policy_net_forward.1} parent=1 // pred_region
      %72 = dma.done [#allocation5], 2048
    $region41: #{double_policy_net_forward.1} parent=1 // pred_fallthru
      _
    %v74 = vld [vmem:[%s0] sm:$0xf]
    %v75 = vld [vmem:[#allocation2] sm:$0xff]
    %v76 = vld [vmem:[#allocation2 + $0x8] sm:$0xff]
    %v77 = vld [vmem:[%s2] sm:$0x3]
    %v79 = vperm.slane %v77, 0
    %v80 = vperm.slane %v77, 1
    %v85 = vunpack.c.l.b16 %v75
    %v86 = vunpack.c.h.b16 %v75
    %v87 = vunpack.c.l.b16 %v76
    %v88 = vunpack.c.h.b16 %v76
    %v89 = vpack.c.b16 %v87, %v85
    %v90 = vpack.c.b16 %v88, %v86
    %vm93 = vcmask 130048
    %v95 = vsel %vm93, %v74, 0
    %97 = vmatpush.bf16.msra.mxu0 0
    %98 = vmatpush.bf16.msra.mxu0 0
    %99 = vmatpush.bf16.msra.mxu0 0
    %100 = vmatpush.bf16.msra.mxu0 0
    %101 = vmatpush.bf16.msra.mxu0 0
    %102 = vmatpush.bf16.msra.mxu0 0
    %103 = vmatpush.bf16.msra.mxu0 0
    %104 = vmatpush.bf16.msra.mxu0 %v89
    %105 = vmatmul.bf16.gmra.mxu0 %v95
    %v106 = vpop.f32.mrf.mxu0
    %v107 = vadd.f32 %v79, %v106
    %v108 = vpop.f32.mrf.mxu0
    %109 = vdwg.mxu0
    %110 = vmatpush.bf16.msra.mxu0 0
    %111 = vmatpush.bf16.msra.mxu0 0
    %112 = vmatpush.bf16.msra.mxu0 0
    %113 = vmatpush.bf16.msra.mxu0 0
    %114 = vmatpush.bf16.msra.mxu0 0
    %115 = vmatpush.bf16.msra.mxu0 0
    %116 = vmatpush.bf16.msra.mxu0 0
    %117 = vmatpush.bf16.msra.mxu0 %v90
    %118 = vmatmul.bf16.gmra.mxu0 %v95
    %v119 = vpop.f32.mrf.mxu0
    %v120 = vadd.f32 %v80, %v119
    %v121 = vpop.f32.mrf.mxu0
    %122 = vdwg.mxu0
    %v123 = vmax.f32 %v107, 0.0
    %v124 = vmax.f32 %v120, 0.0
    %v125 = vpack.c.bf16 %v123, %v123
    %v126 = vpack.c.bf16 %v124, %v124
    %v127 = vld [vmem:[#allocation4] sm:$0xff]
    %v128 = vld [vmem:[#allocation4 + $0x8] sm:$0xff]
    %v129 = vld [vmem:[#allocation4 + $0x10] sm:$0xff]
    %v130 = vld [vmem:[#allocation4 + $0x18] sm:$0xff]
    %v131 = vld [vmem:[#allocation4 + $0x20] sm:$0xff]
    %v132 = vld [vmem:[#allocation4 + $0x28] sm:$0xff]
    %v133 = vld [vmem:[#allocation4 + $0x30] sm:$0xff]
    %v134 = vld [vmem:[#allocation4 + $0x38] sm:$0xff]
    %v135 = vld [vmem:[#allocation4 + $0x40] sm:$0xff]
    %v136 = vld [vmem:[#allocation4 + $0x48] sm:$0xff]
    %v137 = vld [vmem:[#allocation4 + $0x50] sm:$0xff]
    %v138 = vld [vmem:[#allocation4 + $0x58] sm:$0xff]
    %v139 = vld [vmem:[#allocation4 + $0x60] sm:$0xff]
    %v140 = vld [vmem:[#allocation4 + $0x68] sm:$0xff]
    %v141 = vld [vmem:[#allocation4 + $0x70] sm:$0xff]
    %v142 = vld [vmem:[#allocation4 + $0x78] sm:$0xff]
    %v143 = vld [vmem:[#allocation4 + $0x80] sm:$0xff]
    %v144 = vld [vmem:[#allocation4 + $0x88] sm:$0xff]
    %v145 = vld [vmem:[#allocation4 + $0x90] sm:$0xff]
    %v146 = vld [vmem:[#allocation4 + $0x98] sm:$0xff]
    %v147 = vld [vmem:[#allocation4 + $0xa0] sm:$0xff]
    %v148 = vld [vmem:[#allocation4 + $0xa8] sm:$0xff]
    %v149 = vld [vmem:[#allocation4 + $0xb0] sm:$0xff]
    %v150 = vld [vmem:[#allocation4 + $0xb8] sm:$0xff]
    %v151 = vld [vmem:[#allocation4 + $0xc0] sm:$0xff]
    %v152 = vld [vmem:[#allocation4 + $0xc8] sm:$0xff]
    %v153 = vld [vmem:[#allocation4 + $0xd0] sm:$0xff]
    %v154 = vld [vmem:[#allocation4 + $0xd8] sm:$0xff]
    %v155 = vld [vmem:[#allocation4 + $0xe0] sm:$0xff]
    %v156 = vld [vmem:[#allocation4 + $0xe8] sm:$0xff]
    %v157 = vld [vmem:[#allocation4 + $0xf0] sm:$0xff]
    %v158 = vld [vmem:[#allocation4 + $0xf8] sm:$0xff]
    %v159 = vld [vmem:[%s4] sm:$0x3]
    %v161 = vperm.slane %v159, 0
    %v162 = vperm.slane %v159, 1
    %v197 = vunpack.c.l.b16 %v127
    %v198 = vunpack.c.h.b16 %v127
    %v199 = vunpack.c.l.b16 %v128
    %v200 = vunpack.c.h.b16 %v128
    %v201 = vunpack.c.l.b16 %v129
    %v202 = vunpack.c.h.b16 %v129
    %v203 = vunpack.c.l.b16 %v130
    %v204 = vunpack.c.h.b16 %v130
    %v205 = vunpack.c.l.b16 %v131
    %v206 = vunpack.c.h.b16 %v131
    %v207 = vunpack.c.l.b16 %v132
    %v208 = vunpack.c.h.b16 %v132
    %v209 = vunpack.c.l.b16 %v133
    %v210 = vunpack.c.h.b16 %v133
    %v211 = vunpack.c.l.b16 %v134
    %v212 = vunpack.c.h.b16 %v134
    %v213 = vunpack.c.l.b16 %v135
    %v214 = vunpack.c.h.b16 %v135
    %v215 = vunpack.c.l.b16 %v136
    %v216 = vunpack.c.h.b16 %v136
    %v217 = vunpack.c.l.b16 %v137
    %v218 = vunpack.c.h.b16 %v137
    %v219 = vunpack.c.l.b16 %v138
    %v220 = vunpack.c.h.b16 %v138
    %v221 = vunpack.c.l.b16 %v139
    %v222 = vunpack.c.h.b16 %v139
    %v223 = vunpack.c.l.b16 %v140
    %v224 = vunpack.c.h.b16 %v140
    %v225 = vunpack.c.l.b16 %v141
    %v226 = vunpack.c.h.b16 %v141
    %v227 = vunpack.c.l.b16 %v142
    %v228 = vunpack.c.h.b16 %v142
    %v229 = vunpack.c.l.b16 %v143
    %v230 = vunpack.c.h.b16 %v143
    %v231 = vunpack.c.l.b16 %v144
    %v232 = vunpack.c.h.b16 %v144
    %v233 = vunpack.c.l.b16 %v145
    %v234 = vunpack.c.h.b16 %v145
    %v235 = vunpack.c.l.b16 %v146
    %v236 = vunpack.c.h.b16 %v146
    %v237 = vunpack.c.l.b16 %v147
    %v238 = vunpack.c.h.b16 %v147
    %v239 = vunpack.c.l.b16 %v148
    %v240 = vunpack.c.h.b16 %v148
    %v241 = vunpack.c.l.b16 %v149
    %v242 = vunpack.c.h.b16 %v149
    %v243 = vunpack.c.l.b16 %v150
    %v244 = vunpack.c.h.b16 %v150
    %v245 = vunpack.c.l.b16 %v151
    %v246 = vunpack.c.h.b16 %v151
    %v247 = vunpack.c.l.b16 %v152
    %v248 = vunpack.c.h.b16 %v152
    %v249 = vunpack.c.l.b16 %v153
    %v250 = vunpack.c.h.b16 %v153
    %v251 = vunpack.c.l.b16 %v154
    %v252 = vunpack.c.h.b16 %v154
    %v253 = vunpack.c.l.b16 %v155
    %v254 = vunpack.c.h.b16 %v155
    %v255 = vunpack.c.l.b16 %v156
    %v256 = vunpack.c.h.b16 %v156
    %v257 = vunpack.c.l.b16 %v157
    %v258 = vunpack.c.h.b16 %v157
    %v259 = vunpack.c.l.b16 %v158
    %v260 = vunpack.c.h.b16 %v158
    %v261 = vpack.c.b16 %v199, %v197
    %v262 = vpack.c.b16 %v200, %v198
    %v263 = vpack.c.b16 %v203, %v201
    %v264 = vpack.c.b16 %v204, %v202
    %v265 = vpack.c.b16 %v207, %v205
    %v266 = vpack.c.b16 %v208, %v206
    %v267 = vpack.c.b16 %v211, %v209
    %v268 = vpack.c.b16 %v212, %v210
    %v269 = vpack.c.b16 %v215, %v213
    %v270 = vpack.c.b16 %v216, %v214
    %v271 = vpack.c.b16 %v219, %v217
    %v272 = vpack.c.b16 %v220, %v218
    %v273 = vpack.c.b16 %v223, %v221
    %v274 = vpack.c.b16 %v224, %v222
    %v275 = vpack.c.b16 %v227, %v225
    %v276 = vpack.c.b16 %v228, %v226
    %v277 = vpack.c.b16 %v231, %v229
    %v278 = vpack.c.b16 %v232, %v230
    %v279 = vpack.c.b16 %v235, %v233
    %v280 = vpack.c.b16 %v236, %v234
    %v281 = vpack.c.b16 %v239, %v237
    %v282 = vpack.c.b16 %v240, %v238
    %v283 = vpack.c.b16 %v243, %v241
    %v284 = vpack.c.b16 %v244, %v242
    %v285 = vpack.c.b16 %v247, %v245
    %v286 = vpack.c.b16 %v248, %v246
    %v287 = vpack.c.b16 %v251, %v249
    %v288 = vpack.c.b16 %v252, %v250
    %v289 = vpack.c.b16 %v255, %v253
    %v290 = vpack.c.b16 %v256, %v254
    %v291 = vpack.c.b16 %v259, %v257
    %v292 = vpack.c.b16 %v260, %v258
    %325 = vmatpush.bf16.msra.mxu0 %v275
    %326 = vmatpush.bf16.msra.mxu0 %v273
    %327 = vmatpush.bf16.msra.mxu0 %v271
    %328 = vmatpush.bf16.msra.mxu0 %v269
    %329 = vmatpush.bf16.msra.mxu0 %v267
    %330 = vmatpush.bf16.msra.mxu0 %v265
    %331 = vmatpush.bf16.msra.mxu0 %v263
    %332 = vmatpush.bf16.msra.mxu0 %v261
    %333 = vmatmul.bf16.gmra.mxu0 %v125
    %v334 = vpop.f32.mrf.mxu0
    %v335 = vadd.f32 %v161, %v334
    %v336 = vpop.f32.mrf.mxu0
    %337 = vdwg.mxu0
    %338 = vmatpush.bf16.msra.mxu0 %v291
    %339 = vmatpush.bf16.msra.mxu0 %v289
    %340 = vmatpush.bf16.msra.mxu0 %v287
    %341 = vmatpush.bf16.msra.mxu0 %v285
    %342 = vmatpush.bf16.msra.mxu0 %v283
    %343 = vmatpush.bf16.msra.mxu0 %v281
    %344 = vmatpush.bf16.msra.mxu0 %v279
    %345 = vmatpush.bf16.msra.mxu0 %v277
    %346 = vmatmul.bf16.gmra.mxu0 %v126
    %v347 = vpop.f32.mrf.mxu0
    %v348 = vadd.f32 %v335, %v347
    %v349 = vpop.f32.mrf.mxu0
    %350 = vdwg.mxu0
    %351 = vmatpush.bf16.msra.mxu0 %v276
    %352 = vmatpush.bf16.msra.mxu0 %v274
    %353 = vmatpush.bf16.msra.mxu0 %v272
    %354 = vmatpush.bf16.msra.mxu0 %v270
    %355 = vmatpush.bf16.msra.mxu0 %v268
    %356 = vmatpush.bf16.msra.mxu0 %v266
    %357 = vmatpush.bf16.msra.mxu0 %v264
    %358 = vmatpush.bf16.msra.mxu0 %v262
    %359 = vmatmul.bf16.gmra.mxu0 %v125
    %v360 = vpop.f32.mrf.mxu0
    %v361 = vadd.f32 %v162, %v360
    %v362 = vpop.f32.mrf.mxu0
    %363 = vdwg.mxu0
    %364 = vmatpush.bf16.msra.mxu0 %v292
    %365 = vmatpush.bf16.msra.mxu0 %v290
    %366 = vmatpush.bf16.msra.mxu0 %v288
    %367 = vmatpush.bf16.msra.mxu0 %v286
    %368 = vmatpush.bf16.msra.mxu0 %v284
    %369 = vmatpush.bf16.msra.mxu0 %v282
    %370 = vmatpush.bf16.msra.mxu0 %v280
    %371 = vmatpush.bf16.msra.mxu0 %v278
    %372 = vmatmul.bf16.gmra.mxu0 %v126
    %v373 = vpop.f32.mrf.mxu0
    %v374 = vadd.f32 %v361, %v373
    %v375 = vpop.f32.mrf.mxu0
    %376 = vdwg.mxu0
    %v377 = vmax.f32 %v348, 0.0
    %v378 = vmax.f32 %v374, 0.0
    %v379 = vpack.c.bf16 %v377, %v377
    %v380 = vpack.c.bf16 %v378, %v378
    %v381 = vld [vmem:[#allocation6] sm:$0xf]
    %v382 = vld [vmem:[#allocation6 + $0x4] sm:$0xf]
    %v383 = vld [vmem:[#allocation6 + $0x8] sm:$0xf]
    %v384 = vld [vmem:[#allocation6 + $0xc] sm:$0xf]
    %v385 = vld [vmem:[#allocation6 + $0x10] sm:$0xf]
    %v386 = vld [vmem:[#allocation6 + $0x14] sm:$0xf]
    %v387 = vld [vmem:[#allocation6 + $0x18] sm:$0xf]
    %v388 = vld [vmem:[#allocation6 + $0x1c] sm:$0xf]
    %v389 = vld [vmem:[#allocation6 + $0x20] sm:$0xf]
    %v390 = vld [vmem:[#allocation6 + $0x24] sm:$0xf]
    %v391 = vld [vmem:[#allocation6 + $0x28] sm:$0xf]
    %v392 = vld [vmem:[#allocation6 + $0x2c] sm:$0xf]
    %v393 = vld [vmem:[#allocation6 + $0x30] sm:$0xf]
    %v394 = vld [vmem:[#allocation6 + $0x34] sm:$0xf]
    %v395 = vld [vmem:[#allocation6 + $0x38] sm:$0xf]
    %v396 = vld [vmem:[#allocation6 + $0x3c] sm:$0xf]
    %v397 = vld [vmem:[#allocation6 + $0x40] sm:$0xf]
    %v398 = vld [vmem:[#allocation6 + $0x44] sm:$0xf]
    %v399 = vld [vmem:[#allocation6 + $0x48] sm:$0xf]
    %v400 = vld [vmem:[#allocation6 + $0x4c] sm:$0xf]
    %v401 = vld [vmem:[#allocation6 + $0x50] sm:$0xf]
    %v402 = vld [vmem:[#allocation6 + $0x54] sm:$0xf]
    %v403 = vld [vmem:[#allocation6 + $0x58] sm:$0xf]
    %v404 = vld [vmem:[#allocation6 + $0x5c] sm:$0xf]
    %v405 = vld [vmem:[#allocation6 + $0x60] sm:$0xf]
    %v406 = vld [vmem:[#allocation6 + $0x64] sm:$0xf]
    %v407 = vld [vmem:[#allocation6 + $0x68] sm:$0xf]
    %v408 = vld [vmem:[#allocation6 + $0x6c] sm:$0xf]
    %v409 = vld [vmem:[#allocation6 + $0x70] sm:$0xf]
    %v410 = vld [vmem:[#allocation6 + $0x74] sm:$0xf]
    %v411 = vld [vmem:[#allocation6 + $0x78] sm:$0xf]
    %v412 = vld [vmem:[#allocation6 + $0x7c] sm:$0xf]
    %v413 = vld [vmem:[%s6] sm:$0x1]
    %v415 = vperm.slane %v413, 0
    %v449 = vunpack.c.l.b16 %v381
    %v450 = vunpack.c.l.b16 %v382
    %v451 = vunpack.c.l.b16 %v383
    %v452 = vunpack.c.l.b16 %v384
    %v453 = vunpack.c.l.b16 %v385
    %v454 = vunpack.c.l.b16 %v386
    %v455 = vunpack.c.l.b16 %v387
    %v456 = vunpack.c.l.b16 %v388
    %v457 = vunpack.c.l.b16 %v389
    %v458 = vunpack.c.l.b16 %v390
    %v459 = vunpack.c.l.b16 %v391
    %v460 = vunpack.c.l.b16 %v392
    %v461 = vunpack.c.l.b16 %v393
    %v462 = vunpack.c.l.b16 %v394
    %v463 = vunpack.c.l.b16 %v395
    %v464 = vunpack.c.l.b16 %v396
    %v465 = vunpack.c.l.b16 %v397
    %v466 = vunpack.c.l.b16 %v398
    %v467 = vunpack.c.l.b16 %v399
    %v468 = vunpack.c.l.b16 %v400
    %v469 = vunpack.c.l.b16 %v401
    %v470 = vunpack.c.l.b16 %v402
    %v471 = vunpack.c.l.b16 %v403
    %v472 = vunpack.c.l.b16 %v404
    %v473 = vunpack.c.l.b16 %v405
    %v474 = vunpack.c.l.b16 %v406
    %v475 = vunpack.c.l.b16 %v407
    %v476 = vunpack.c.l.b16 %v408
    %v477 = vunpack.c.l.b16 %v409
    %v478 = vunpack.c.l.b16 %v410
    %v479 = vunpack.c.l.b16 %v411
    %v480 = vunpack.c.l.b16 %v412
    %v481 = vpack.c.b16 %v450, %v449
    %v482 = vpack.c.b16 %v452, %v451
    %v483 = vpack.c.b16 %v454, %v453
    %v484 = vpack.c.b16 %v456, %v455
    %v485 = vpack.c.b16 %v458, %v457
    %v486 = vpack.c.b16 %v460, %v459
    %v487 = vpack.c.b16 %v462, %v461
    %v488 = vpack.c.b16 %v464, %v463
    %v489 = vpack.c.b16 %v466, %v465
    %v490 = vpack.c.b16 %v468, %v467
    %v491 = vpack.c.b16 %v470, %v469
    %v492 = vpack.c.b16 %v472, %v471
    %v493 = vpack.c.b16 %v474, %v473
    %v494 = vpack.c.b16 %v476, %v475
    %v495 = vpack.c.b16 %v478, %v477
    %v496 = vpack.c.b16 %v480, %v479
    %513 = vmatpush.bf16.msra.mxu0 %v488
    %514 = vmatpush.bf16.msra.mxu0 %v487
    %515 = vmatpush.bf16.msra.mxu0 %v486
    %516 = vmatpush.bf16.msra.mxu0 %v485
    %517 = vmatpush.bf16.msra.mxu0 %v484
    %518 = vmatpush.bf16.msra.mxu0 %v483
    %519 = vmatpush.bf16.msra.mxu0 %v482
    %520 = vmatpush.bf16.msra.mxu0 %v481
    %521 = vmatmul.bf16.gmra.mxu0 %v379
    %v522 = vpop.f32.mrf.mxu0
    %v523 = vadd.f32 %v415, %v522
    %v524 = vpop.f32.mrf.mxu0
    %525 = vdwg.mxu0
    %526 = vmatpush.bf16.msra.mxu0 %v496
    %527 = vmatpush.bf16.msra.mxu0 %v495
    %528 = vmatpush.bf16.msra.mxu0 %v494
    %529 = vmatpush.bf16.msra.mxu0 %v493
    %530 = vmatpush.bf16.msra.mxu0 %v492
    %531 = vmatpush.bf16.msra.mxu0 %v491
    %532 = vmatpush.bf16.msra.mxu0 %v490
    %533 = vmatpush.bf16.msra.mxu0 %v489
    %534 = vmatmul.bf16.gmra.mxu0 %v380
    %v535 = vpop.f32.mrf.mxu0
    %v536 = vadd.f32 %v523, %v535
    %v537 = vpop.f32.mrf.mxu0
    %538 = vdwg.mxu0
    %v539 = vtanh.pop %v536
    %540 = vst [vmem:[%s7] sm:$0xff] %v539
    // Predicated region
    $region42: #{double_policy_net_forward.1} parent=1 // pred_check
      _
    $region43: #{double_policy_net_forward.1} parent=1 // pred_check_branch
      %542 = sbr.rel (0) target = $region45
    $region44: #{double_policy_net_forward.1} parent=1 // pred_region
      _
    $region45: #{double_policy_net_forward.1} parent=1 // pred_fallthru
      _
    // Predicated region
    $region46: #{double_policy_net_forward.1} parent=1 // pred_check
      _
    $region47: #{double_policy_net_forward.1} parent=1 // pred_check_branch
      %544 = sbr.rel (0) target = $region49
    $region48: #{double_policy_net_forward.1} parent=1 // pred_region
      _
    $region49: #{double_policy_net_forward.1} parent=1 // pred_fallthru
      _
    %545 = vsyncpa [#allocation3], 1
    %546 = vsyncpa [#allocation5], 1

</llo_original>
